<compile_context>
chip_gen: v7x
topology: tpu7x:2x2x1
jax: 0.10.0
libtpu: 0.0.40
codegen_flags: <defaults>
</compile_context>

<pallas_src>
import jax
import jax.numpy as jnp
from jax.experimental import pallas as pl
from jax.experimental.pallas import tpu as pltpu

LANE = 128


def _round_up(a, b):
    return (a + b - 1) // b * b


def ffr_kernel(x_ref, w1_ref, b1_ref, w2_ref, b2_ref, o_ref, acc_ref):
    """Grid = (row tiles i, d_ff tiles j).  Per step:
         h_j    = relu(x_i @ W1[:, j] + b1[j])      (MXU bf16 in / f32 acc)
         acc_i += h_j @ W2[j, :]                    (MXU bf16 in / f32 acc)
       Last j:  o_i = leaky_relu(x_i + acc_i + b2, slope=0.01).
    """
    j = pl.program_id(1)

    @pl.when(j == 0)
    def _():
        acc_ref[...] = jnp.zeros_like(acc_ref)

    x = x_ref[...]                                   # (tm, dmp), input dtype (f32)
    xc = x.astype(w1_ref.dtype)                      # MXU operand dtype (bf16)
    h = jnp.dot(xc, w1_ref[...], preferred_element_type=jnp.float32)
    h = jnp.maximum(h + b1_ref[...], 0.0)            # bias + ReLU in f32
    acc_ref[...] += jnp.dot(h.astype(w2_ref.dtype), w2_ref[...],
                            preferred_element_type=jnp.float32)

    @pl.when(j == pl.num_programs(1) - 1)
    def _():
        z = x.astype(jnp.float32) + acc_ref[...] + b2_ref[...]
        o_ref[...] = jnp.where(z >= 0.0, z, 0.01 * z).astype(o_ref.dtype)


def ffr_layer(x, w1, b1, w2, b2, *, tm=256, tff_max=512,
              compute_dtype=jnp.bfloat16):
    """x: (..., d_model); w1: (d_model, d_ff); w2: (d_ff, d_model).

    Eval-mode FFRLayer: leaky_relu(x + relu(x @ W1 + b1) @ W2 + b2, 0.01).
    """
    orig_shape = x.shape
    d_model = orig_shape[-1]
    d_ff = w1.shape[1]
    x2d = x.reshape(-1, d_model)
    M = x2d.shape[0]

    # --- lane-dense padding: feature dims -> multiples of 128, rows -> tile ---
    dmp = _round_up(d_model, LANE)
    dfp = _round_up(d_ff, LANE)
    # Largest d_ff tile (multiple of 128, <= tff_max) that divides the padded d_ff.
    nff = dfp // LANE
    kmax = max(1, min(nff, tff_max // LANE))
    kdiv = max(d for d in range(1, kmax + 1) if nff % d == 0)
    tff = LANE * kdiv
    # Row tile: big by default, shrunk for tiny inputs; multiple of 16 (bf16 sublanes).
    tm = max(16, min(tm, _round_up(M, 16)))
    mp = _round_up(M, tm)

    x_p = jnp.pad(x2d, ((0, mp - M), (0, dmp - d_model)))
    w1_p = jnp.pad(w1, ((0, dmp - d_model), (0, dfp - d_ff))).astype(compute_dtype)
    w2_p = jnp.pad(w2, ((0, dfp - d_ff), (0, dmp - d_model))).astype(compute_dtype)
    b1_p = jnp.pad(b1, (0, dfp - d_ff)).reshape(1, dfp).astype(jnp.float32)
    b2_p = jnp.pad(b2, (0, dmp - d_model)).reshape(1, dmp).astype(jnp.float32)

    grid = (mp // tm, dfp // tff)
    flops = 2 * mp * dmp * dfp * 2                    # two matmuls per row
    bytes_accessed = (x_p.size + mp * dmp) * 4 + grid[0] * (
        w1_p.nbytes + w2_p.nbytes + b1_p.nbytes + b2_p.nbytes)

    out = pl.pallas_call(
        ffr_kernel,
        out_shape=jax.ShapeDtypeStruct((mp, dmp), x.dtype),
        grid_spec=pltpu.PrefetchScalarGridSpec(
            num_scalar_prefetch=0,
            grid=grid,
            in_specs=[
                pl.BlockSpec((tm, dmp), lambda i, j: (i, 0)),    # x row tile
                pl.BlockSpec((dmp, tff), lambda i, j: (0, j)),   # W1 d_ff slice
                pl.BlockSpec((1, tff), lambda i, j: (0, j)),     # b1 slice
                pl.BlockSpec((tff, dmp), lambda i, j: (j, 0)),   # W2 d_ff slice
                pl.BlockSpec((1, dmp), lambda i, j: (0, 0)),     # b2 (invariant)
            ],
            out_specs=pl.BlockSpec((tm, dmp), lambda i, j: (i, 0)),
            scratch_shapes=[pltpu.VMEM((tm, dmp), jnp.float32)],  # y accumulator
        ),
        compiler_params=pltpu.CompilerParams(
            dimension_semantics=("parallel", "arbitrary"),
            # Explicit scoped-VMEM cap (v7x has only 64 MiB physical VMEM).
            vmem_limit_bytes=64 * 1024 * 1024,
        ),
        cost_estimate=pl.CostEstimate(
            flops=flops, transcendentals=0, bytes_accessed=bytes_accessed),
    )(x_p, w1_p, b1_p, w2_p, b2_p)

    return out[:M, :d_model].reshape(orig_shape)


def init_linear_params(key, in_features, out_features):
    """Deterministic init mimicking torch.nn.Linear default (uniform +/- 1/sqrt(fan_in)).
    Weight returned pre-transposed to (in_features, out_features)."""
    kw, kb = jax.random.split(key)
    bound = 1.0 / (in_features ** 0.5)
    w = jax.random.uniform(kw, (in_features, out_features), jnp.float32,
                           minval=-bound, maxval=bound)
    b = jax.random.uniform(kb, (out_features,), jnp.float32,
                           minval=-bound, maxval=bound)
    return w, b


if __name__ == "__main__":
    feat_dim = 32     # d_model
    hidden_dim = 64   # d_ff
    batch, seq = 2, 8

    key = jax.random.PRNGKey(0)
    kx, k1, k2 = jax.random.split(key, 3)

    x = jax.random.normal(kx, (batch, seq, feat_dim), jnp.float32)
    w1, b1 = init_linear_params(k1, feat_dim, hidden_dim)
    w2, b2 = init_linear_params(k2, hidden_dim, feat_dim)

    out = ffr_layer(x, w1, b1, w2, b2)
    jax.block_until_ready(out)
    assert out.shape == x.shape

    # Reference 1: mirrors the kernel's bf16-MXU / f32-accumulate precision.
    cd = jnp.bfloat16
    x2d = x.reshape(-1, feat_dim)
    h_m = jnp.maximum(
        jnp.dot(x2d.astype(cd), w1.astype(cd),
                preferred_element_type=jnp.float32) + b1, 0.0)
    y_m = jnp.dot(h_m.astype(cd), w2.astype(cd),
                  preferred_element_type=jnp.float32) + b2
    z_m = x2d + y_m
    ref_m = jnp.where(z_m >= 0.0, z_m, 0.01 * z_m).reshape(x.shape)
    assert jnp.allclose(out, ref_m, atol=2e-3, rtol=2e-3), \
        "mismatch vs bf16-matched reference"

    # Reference 2: pure f32 PyTorch-equivalent (loose tol covers bf16 rounding).
    h_ref = jnp.maximum(x @ w1 + b1, 0.0)
    y_ref = h_ref @ w2 + b2
    z_ref = x + y_ref
    ref = jnp.where(z_ref >= 0.0, z_ref, 0.01 * z_ref)
    assert jnp.allclose(out, ref, atol=5e-2, rtol=5e-2), \
        "mismatch vs f32 reference"

    print("KERNEL_OK")
</pallas_src>

<mosaic_0001>
module attributes {stable_mosaic.version = 11 : i64} {
  func.func @ffr_kernel(%arg0: i32, %arg1: i32, %arg2: memref<16x128xf32, #tpu.memory_space<vmem>>, %arg3: memref<128x128xbf16, #tpu.memory_space<vmem>>, %arg4: memref<1x128xf32, #tpu.memory_space<vmem>>, %arg5: memref<128x128xbf16, #tpu.memory_space<vmem>>, %arg6: memref<1x128xf32, #tpu.memory_space<vmem>>, %arg7: memref<16x128xf32, #tpu.memory_space<vmem>>, %arg8: memref<16x128xf32, #tpu.memory_space<vmem>>) attributes {dimension_semantics = [#tpu.dimension_semantics<parallel>, #tpu.dimension_semantics<arbitrary>], iteration_bounds = array<i64: 1, 1>, scalar_prefetch = 0 : i64, scratch_operands = 1 : i64, tpu.core_type = #tpu.core_type<tc>, window_params = [{transform_indices = @transform_0, window_bounds = array<i64: 16, 128>}, {transform_indices = @transform_1, window_bounds = array<i64: 128, 128>}, {transform_indices = @transform_2, window_bounds = array<i64: 1, 128>}, {transform_indices = @transform_3, window_bounds = array<i64: 128, 128>}, {pipeline_mode = #tpu.pipeline_mode<synchronous>, transform_indices = @transform_4, window_bounds = array<i64: 1, 128>}, {transform_indices = @transform_5, window_bounds = array<i64: 16, 128>}]} {
    %c0_i32 = arith.constant 0 : i32
    %0 = arith.cmpi eq, %arg1, %c0_i32 : i32
    %1 = arith.extui %0 : i1 to i32
    %c0_i32_0 = arith.constant 0 : i32
    %2 = arith.cmpi ne, %1, %c0_i32_0 : i32
    scf.if %2 {
      %cst_16 = arith.constant 0.000000e+00 : f32
      %21 = vector.broadcast %cst_16 : f32 to vector<16x128xf32>
      %c0_17 = arith.constant 0 : index
      %c0_18 = arith.constant 0 : index
      %22 = vector.load %arg8[%c0_17, %c0_18] : memref<16x128xf32, #tpu.memory_space<vmem>>, vector<16x128xf32>
      tpu.vector_store %arg8[%c0_17, %c0_18], %21 {strides = array<i32>} : memref<16x128xf32, #tpu.memory_space<vmem>>, vector<16x128xf32>,
    } else {
    }
    %c0 = arith.constant 0 : index
    %c0_1 = arith.constant 0 : index
    %3 = vector.load %arg2[%c0, %c0_1] : memref<16x128xf32, #tpu.memory_space<vmem>>, vector<16x128xf32>
    %4 = arith.truncf %3 : vector<16x128xf32> to vector<16x128xbf16>
    %c0_2 = arith.constant 0 : index
    %c0_3 = arith.constant 0 : index
    %5 = vector.load %arg3[%c0_2, %c0_3] : memref<128x128xbf16, #tpu.memory_space<vmem>>, vector<128x128xbf16>
    %cst = arith.constant dense<0.000000e+00> : vector<16x128xf32>
    %6 = tpu.matmul %4, %5, %cst {dimension_numbers = #tpu.dot_dimension_numbers<[1], [0], [0], [1], [0, 0, 1, 1], [], []>} : vector<16x128xbf16>, vector<128x128xbf16>, vector<16x128xf32> -> vector<16x128xf32>
    %c0_4 = arith.constant 0 : index
    %c0_5 = arith.constant 0 : index
    %7 = vector.load %arg4[%c0_4, %c0_5] : memref<1x128xf32, #tpu.memory_space<vmem>>, vector<1x128xf32>
    %8 = vector.broadcast %7 : vector<1x128xf32> to vector<16x128xf32>
    %9 = arith.addf %6, %8 : vector<16x128xf32>
    %cst_6 = arith.constant 0.000000e+00 : f32
    %10 = vector.broadcast %cst_6 : f32 to vector<16x128xf32>
    %11 = arith.maximumf %9, %10 : vector<16x128xf32>
    %c0_7 = arith.constant 0 : index
    %c0_8 = arith.constant 0 : index
    %12 = vector.load %arg8[%c0_7, %c0_8] : memref<16x128xf32, #tpu.memory_space<vmem>>, vector<16x128xf32>
    %13 = arith.truncf %11 : vector<16x128xf32> to vector<16x128xbf16>
    %c0_9 = arith.constant 0 : index
    %c0_10 = arith.constant 0 : index
    %14 = vector.load %arg5[%c0_9, %c0_10] : memref<128x128xbf16, #tpu.memory_space<vmem>>, vector<128x128xbf16>
    %cst_11 = arith.constant dense<0.000000e+00> : vector<16x128xf32>
    %15 = tpu.matmul %13, %14, %cst_11 {dimension_numbers = #tpu.dot_dimension_numbers<[1], [0], [0], [1], [0, 0, 1, 1], [], []>} : vector<16x128xbf16>, vector<128x128xbf16>, vector<16x128xf32> -> vector<16x128xf32>
    %16 = arith.addf %12, %15 : vector<16x128xf32>
    %c0_12 = arith.constant 0 : index
    %c0_13 = arith.constant 0 : index
    %17 = vector.load %arg8[%c0_12, %c0_13] : memref<16x128xf32, #tpu.memory_space<vmem>>, vector<16x128xf32>
    tpu.vector_store %arg8[%c0_12, %c0_13], %16 {strides = array<i32>} : memref<16x128xf32, #tpu.memory_space<vmem>>, vector<16x128xf32>,
    %c0_i32_14 = arith.constant 0 : i32
    %18 = arith.cmpi eq, %arg1, %c0_i32_14 : i32
    %19 = arith.extui %18 : i1 to i32
    %c0_i32_15 = arith.constant 0 : i32
    %20 = arith.cmpi ne, %19, %c0_i32_15 : i32
    scf.if %20 {
      %c0_16 = arith.constant 0 : index
      %c0_17 = arith.constant 0 : index
      %21 = vector.load %arg8[%c0_16, %c0_17] : memref<16x128xf32, #tpu.memory_space<vmem>>, vector<16x128xf32>
      %22 = arith.addf %3, %21 : vector<16x128xf32>
      %c0_18 = arith.constant 0 : index
      %c0_19 = arith.constant 0 : index
      %23 = vector.load %arg6[%c0_18, %c0_19] : memref<1x128xf32, #tpu.memory_space<vmem>>, vector<1x128xf32>
      %24 = vector.broadcast %23 : vector<1x128xf32> to vector<16x128xf32>
      %25 = arith.addf %22, %24 : vector<16x128xf32>
      %cst_20 = arith.constant 0.000000e+00 : f32
      %26 = vector.broadcast %cst_20 : f32 to vector<16x128xf32>
      %27 = arith.cmpf oge, %25, %26 : vector<16x128xf32>
      %cst_21 = arith.constant 0.00999999977 : f32
      %28 = vector.broadcast %cst_21 : f32 to vector<16x128xf32>
      %29 = arith.mulf %28, %25 : vector<16x128xf32>
      %30 = arith.select %27, %25, %29 : vector<16x128xi1>, vector<16x128xf32>
      %c0_22 = arith.constant 0 : index
      %c0_23 = arith.constant 0 : index
      %31 = vector.load %arg7[%c0_22, %c0_23] : memref<16x128xf32, #tpu.memory_space<vmem>>, vector<16x128xf32>
      tpu.vector_store %arg7[%c0_22, %c0_23], %30 {strides = array<i32>} : memref<16x128xf32, #tpu.memory_space<vmem>>, vector<16x128xf32>,
    } else {
    }
    return
  }
  func.func @transform_0(%arg0: i32, %arg1: i32) -> (i32, i32) {
    %c0_i32 = arith.constant 0 : i32
    %c0_i32_0 = arith.constant 0 : i32
    return %arg0, %c0_i32 : i32, i32
  }
  func.func @transform_1(%arg0: i32, %arg1: i32) -> (i32, i32) {
    %c0_i32 = arith.constant 0 : i32
    %c0_i32_0 = arith.constant 0 : i32
    return %c0_i32, %arg1 : i32, i32
  }
  func.func @transform_2(%arg0: i32, %arg1: i32) -> (i32, i32) {
    %c0_i32 = arith.constant 0 : i32
    %c0_i32_0 = arith.constant 0 : i32
    return %c0_i32, %arg1 : i32, i32
  }
  func.func @transform_3(%arg0: i32, %arg1: i32) -> (i32, i32) {
    %c0_i32 = arith.constant 0 : i32
    %c0_i32_0 = arith.constant 0 : i32
    return %arg1, %c0_i32 : i32, i32
  }
  func.func @transform_4(%arg0: i32, %arg1: i32) -> (i32, i32) {
    %c0_i32 = arith.constant 0 : i32
    %c0_i32_0 = arith.constant 0 : i32
    %c0_i32_1 = arith.constant 0 : i32
    return %c0_i32, %c0_i32_0 : i32, i32
  }
  func.func @transform_5(%arg0: i32, %arg1: i32) -> (i32, i32) {
    %c0_i32 = arith.constant 0 : i32
    %c0_i32_0 = arith.constant 0 : i32
    return %arg0, %c0_i32 : i32, i32
  }
}

</mosaic_0001>

<llo_original>
// kernel: tpu_custom_call.1
$region0: #{tpu_custom_call.1}
  #allocation0 [shape = 'u32[]', space=smem, size = 0x4, offset = 0x4, fixed_abs, tag = 'smem constant byte address 0x4 - core index']
  #allocation1 [shape = 'u32[144,128]{1,0:T(1,128)}', space=vmem, size = 0x12000, scoped, tag = 'internal scratch']
  #allocation2 [shape = 'f32[16,128]{1,0:T(8,128)}', space=vmem, size = 0x2000, scoped, tag = 'scratch operand']
  %s0 = inlined_call_operand.hbm [shape: f32[16,128], index: 0, kind: input, shape index: {}]
  %s1 = inlined_call_operand.hbm [shape: bf16[128,128], index: 1, kind: input, shape index: {}]
  %s2 = inlined_call_operand.hbm [shape: f32[1,128], index: 2, kind: input, shape index: {}]
  %s3 = inlined_call_operand.hbm [shape: bf16[128,128], index: 3, kind: input, shape index: {}]
  %s4 = inlined_call_operand.hbm [shape: f32[1,128], index: 4, kind: input, shape index: {}]
  %s5 = inlined_call_operand.hbm [shape: f32[16,128], index: 5, kind: output, shape index: {}]
  %s6 = sld [smem:[#allocation0]]
  $region58: #{tpu_custom_call.1} parent=0
    _
  %s8 = ssub.s32 1, %s6
  %s9 = scalar_select 0, %s8, %s6
  $region1: #{tpu_custom_call.1} parent=0
    #allocation3 [shape = 'u8[8192]{0}', space=vmem, size = 0x2000, scoped, tag = 'input window, operand 0, single buffered']
    #allocation4 [shape = 's32[1]{0}', space=sflag, size = 0x4, scoped, tag = 'scoped memory for tpu_custom_call.1']
    #allocation5 [shape = 's32[1]{0}', space=sflag, size = 0x4, scoped, tag = 'scoped memory for tpu_custom_call.1']
    #allocation6 [shape = 'u8[32768]{0}', space=vmem, size = 0x8000, scoped, tag = 'input window, operand 1, single buffered']
    #allocation7 [shape = 's32[1]{0}', space=sflag, size = 0x4, scoped, tag = 'scoped memory for tpu_custom_call.1']
    #allocation8 [shape = 'u8[512]{0}', space=vmem, size = 0x400, scoped, tag = 'input window, operand 2, single buffered']
    #allocation9 [shape = 'u8[32768]{0}', space=vmem, size = 0x8000, scoped, tag = 'input window, operand 3, single buffered']
    #allocation10 [shape = 's32[1]{0}', space=sflag, size = 0x4, scoped, tag = 'scoped memory for tpu_custom_call.1']
    #allocation11 [shape = 'u8[512]{0}', space=vmem, size = 0x400, scoped, tag = 'input window, operand 4, single buffered']
    #allocation12 [shape = 'u8[8192]{0}', space=vmem, size = 0x2000, scoped, tag = 'output window, operand 0, single buffered']
    %10 = vsyncpa [#allocation4], 0
    %11 = vsyncpa [#allocation7], 0
    %12 = vsyncpa [#allocation10], 0
    %13 = vsyncpa [#allocation5], 0
    // Predicated region
    $region2: #{tpu_custom_call.1} parent=1 // pred_check
      _
    $region3: #{tpu_custom_call.1} parent=1 // pred_check_branch
      %15 = sbr.rel (0) target = $region5
    $region4: #{tpu_custom_call.1} parent=1 // pred_region
      %s17 = ssub.s32 256, 256
      %18 = vsyncadd [#allocation4], %s17
      %s19 = sshll.u32 [#allocation3], 4
      %s20 = int_to_ptr.vmem [resolvable:$true] %s19
      %25 = dma.hbm_to_vmem [thread:$0]  %s0, 256, %s20, [#allocation4], 128, 128, 8
    $region5: #{tpu_custom_call.1} parent=1 // pred_fallthru
      _
    // Predicated region
    $region6: #{tpu_custom_call.1} parent=1 // pred_check
      _
    $region7: #{tpu_custom_call.1} parent=1 // pred_check_branch
      %27 = sbr.rel (0) target = $region9
    $region8: #{tpu_custom_call.1} parent=1 // pred_region
      %s29 = ssub.s32 1024, 1024
      %30 = vsyncadd [#allocation7], %s29
      %s31 = sshll.u32 [#allocation6], 4
      %s32 = int_to_ptr.vmem [resolvable:$true] %s31
      %37 = dma.hbm_to_vmem [thread:$0]  %s1, 1024, %s32, [#allocation7], 64, 64, 4
    $region9: #{tpu_custom_call.1} parent=1 // pred_fallthru
      _
    // Predicated region
    $region10: #{tpu_custom_call.1} parent=1 // pred_check
      _
    $region11: #{tpu_custom_call.1} parent=1 // pred_check_branch
      %39 = sbr.rel (0) target = $region13
    $region12: #{tpu_custom_call.1} parent=1 // pred_region
      %s41 = ssub.s32 16, 16
      %42 = vsyncadd [#allocation7], %s41
      %s44 = sshll.u32 [#allocation8], 4
      %s45 = int_to_ptr.vmem [resolvable:$true] %s44
      %47 = dma.hbm_to_vmem [thread:$0]  %s2, 16, %s45, [#allocation7]
    $region13: #{tpu_custom_call.1} parent=1 // pred_fallthru
      _
    // Predicated region
    $region14: #{tpu_custom_call.1} parent=1 // pred_check
      _
    $region15: #{tpu_custom_call.1} parent=1 // pred_check_branch
      %49 = sbr.rel (0) target = $region17
    $region16: #{tpu_custom_call.1} parent=1 // pred_region
      %s51 = ssub.s32 1024, 1024
      %52 = vsyncadd [#allocation10], %s51
      %s53 = sshll.u32 [#allocation9], 4
      %s54 = int_to_ptr.vmem [resolvable:$true] %s53
      %59 = dma.hbm_to_vmem [thread:$0]  %s3, 1024, %s54, [#allocation10], 64, 64, 4
    $region17: #{tpu_custom_call.1} parent=1 // pred_fallthru
      _
    // Predicated region
    $region18: #{tpu_custom_call.1} parent=1 // pred_check
      _
    $region19: #{tpu_custom_call.1} parent=1 // pred_check_branch
      %61 = sbr.rel (0) target = $region21
    $region20: #{tpu_custom_call.1} parent=1 // pred_region
      %s63 = ssub.s32 16, 16
      %64 = vsyncadd [#allocation10], %s63
      %s66 = sshll.u32 [#allocation11], 4
      %s67 = int_to_ptr.vmem [resolvable:$true] %s66
      %69 = dma.hbm_to_vmem [thread:$0]  %s4, 16, %s67, [#allocation10]
    $region21: #{tpu_custom_call.1} parent=1 // pred_fallthru
      _
    // Predicated region
    $region22: #{tpu_custom_call.1} parent=1 // pred_check
      _
    $region23: #{tpu_custom_call.1} parent=1 // pred_check_branch
      %71 = sbr.rel (0) target = $region25
    $region24: #{tpu_custom_call.1} parent=1 // pred_region
      %72 = dma.done [#allocation4], 256
    $region25: #{tpu_custom_call.1} parent=1 // pred_fallthru
      _
    // Predicated region
    $region26: #{tpu_custom_call.1} parent=1 // pred_check
      _
    $region27: #{tpu_custom_call.1} parent=1 // pred_check_branch
      %74 = sbr.rel (0) target = $region29
    $region28: #{tpu_custom_call.1} parent=1 // pred_region
      %75 = dma.done [#allocation7], 1024
    $region29: #{tpu_custom_call.1} parent=1 // pred_fallthru
      _
    // Predicated region
    $region30: #{tpu_custom_call.1} parent=1 // pred_check
      _
    $region31: #{tpu_custom_call.1} parent=1 // pred_check_branch
      %77 = sbr.rel (0) target = $region33
    $region32: #{tpu_custom_call.1} parent=1 // pred_region
      %78 = dma.done [#allocation7], 16
    $region33: #{tpu_custom_call.1} parent=1 // pred_fallthru
      _
    // Predicated region
    $region34: #{tpu_custom_call.1} parent=1 // pred_check
      _
    $region35: #{tpu_custom_call.1} parent=1 // pred_check_branch
      %80 = sbr.rel (0) target = $region37
    $region36: #{tpu_custom_call.1} parent=1 // pred_region
      %81 = dma.done [#allocation10], 1024
    $region37: #{tpu_custom_call.1} parent=1 // pred_fallthru
      _
    // Predicated region
    $region38: #{tpu_custom_call.1} parent=1 // pred_check
      _
    $region39: #{tpu_custom_call.1} parent=1 // pred_check_branch
      %83 = sbr.rel (0) target = $region41
    $region40: #{tpu_custom_call.1} parent=1 // pred_region
      %84 = dma.done [#allocation10], 16
    $region41: #{tpu_custom_call.1} parent=1 // pred_fallthru
      _
    %p86 = scmp.eq.s32.totalorder 0, 0
    // Predicated region
    $region42: #{tpu_custom_call.1} parent=1 // pred_check
      %p87 = pneg %p86
    $region43: #{tpu_custom_call.1} parent=1 // pred_check_branch
      %89 = sbr.rel (%p87) target = $region45
    $region44: #{tpu_custom_call.1} parent=1 // pred_region
      %90 = vst [vmem:[#allocation2] sm:$0xff] 0.0
      %91 = vst [vmem:[#allocation2 + $0x8] sm:$0xff] 0.0
    $region45: #{tpu_custom_call.1} parent=1 // pred_fallthru
      _
    %v92 = vld [vmem:[#allocation3] sm:$0xff]
    %v93 = vld [vmem:[#allocation3 + $0x8] sm:$0xff]
    %v94 = vpack.c.bf16 %v93, %v92
    %v95 = vld [vmem:[#allocation6] sm:$0xf]
    %v96 = vld [vmem:[#allocation6 + $0x4] sm:$0xf]
    %v97 = vld [vmem:[#allocation6 + $0x8] sm:$0xf]
    %v98 = vld [vmem:[#allocation6 + $0xc] sm:$0xf]
    %v99 = vld [vmem:[#allocation6 + $0x10] sm:$0xf]
    %v100 = vld [vmem:[#allocation6 + $0x14] sm:$0xf]
    %v101 = vld [vmem:[#allocation6 + $0x18] sm:$0xf]
    %v102 = vld [vmem:[#allocation6 + $0x1c] sm:$0xf]
    %v103 = vld [vmem:[#allocation6 + $0x20] sm:$0xf]
    %v104 = vld [vmem:[#allocation6 + $0x24] sm:$0xf]
    %v105 = vld [vmem:[#allocation6 + $0x28] sm:$0xf]
    %v106 = vld [vmem:[#allocation6 + $0x2c] sm:$0xf]
    %v107 = vld [vmem:[#allocation6 + $0x30] sm:$0xf]
    %v108 = vld [vmem:[#allocation6 + $0x34] sm:$0xf]
    %v109 = vld [vmem:[#allocation6 + $0x38] sm:$0xf]
    %v110 = vld [vmem:[#allocation6 + $0x3c] sm:$0xf]
    %v111 = vld [vmem:[#allocation8] sm:$0x1]
    %v113 = vlaneseq
    %v114 = vshrl.u32 %v113, 7
    %v115 = vsub.s32 0, %v114
    %v116 = vrot.slane %v111, %v115
    %v134 = vunpack.c.l.b16 %v95
    %v135 = vunpack.c.l.b16 %v96
    %v136 = vunpack.c.l.b16 %v97
    %v137 = vunpack.c.l.b16 %v98
    %v138 = vunpack.c.l.b16 %v99
    %v139 = vunpack.c.l.b16 %v100
    %v140 = vunpack.c.l.b16 %v101
    %v141 = vunpack.c.l.b16 %v102
    %v142 = vunpack.c.l.b16 %v103
    %v143 = vunpack.c.l.b16 %v104
    %v144 = vunpack.c.l.b16 %v105
    %v145 = vunpack.c.l.b16 %v106
    %v146 = vunpack.c.l.b16 %v107
    %v147 = vunpack.c.l.b16 %v108
    %v148 = vunpack.c.l.b16 %v109
    %v149 = vunpack.c.l.b16 %v110
    %v150 = vpack.c.b16 %v135, %v134
    %v151 = vpack.c.b16 %v137, %v136
    %v152 = vpack.c.b16 %v139, %v138
    %v153 = vpack.c.b16 %v141, %v140
    %v154 = vpack.c.b16 %v143, %v142
    %v155 = vpack.c.b16 %v145, %v144
    %v156 = vpack.c.b16 %v147, %v146
    %v157 = vpack.c.b16 %v149, %v148
    %166 = vmatprep.subr.bf16.mxu0 0
    %167 = vmatpush1.bf16.msra.mxu0 %v150
    %168 = vmatprep.subr.bf16.mxu0 0
    %169 = vmatpush1.bf16.msra.mxu0 %v151
    %170 = vmatprep.subr.bf16.mxu0 0
    %171 = vmatpush1.bf16.msra.mxu0 %v152
    %172 = vmatprep.subr.bf16.mxu0 0
    %173 = vmatpush1.bf16.msra.mxu0 %v153
    %174 = vmatprep.subr.bf16.mxu0 0
    %175 = vmatpush1.bf16.msra.mxu0 %v154
    %176 = vmatprep.subr.bf16.mxu0 0
    %177 = vmatpush1.bf16.msra.mxu0 %v155
    %178 = vmatprep.subr.bf16.mxu0 0
    %179 = vmatpush1.bf16.msra.mxu0 %v156
    %180 = vmatprep.subr.bf16.mxu0 0
    %181 = vmatpush1.bf16.msra.mxu0 %v157
    %182 = vmatprep.subr.bf16.mxu0 0
    %183 = vmatpush1.bf16.msra.mxu0 0
    %184 = vmatprep.subr.bf16.mxu0 0
    %185 = vmatpush1.bf16.msra.mxu0 0
    %186 = vmatprep.subr.bf16.mxu0 0
    %187 = vmatpush1.bf16.msra.mxu0 0
    %188 = vmatprep.subr.bf16.mxu0 0
    %189 = vmatpush1.bf16.msra.mxu0 0
    %190 = vmatprep.subr.bf16.mxu0 0
    %191 = vmatpush1.bf16.msra.mxu0 0
    %192 = vmatprep.subr.bf16.mxu0 0
    %193 = vmatpush1.bf16.msra.mxu0 0
    %194 = vmatprep.subr.bf16.mxu0 0
    %195 = vmatpush1.bf16.msra.mxu0 0
    %196 = vmatprep.subr.bf16.mxu0 0
    %197 = vmatpush1.bf16.msra.mxu0 0
    %198 = vmatprep.mubr.bf16.mxu0 0
    %199 = vmatmul.mubr.bf16.gmra.mrb[0].mxu0 %v94
    %v200 = vpop.f32.mrb[0].mxu0
    %v201 = vadd.f32 %v116, %v200
    %v202 = vpop.f32.mrb[0].mxu0
    %v203 = vpop.f32.mrb[0].mxu0
    %v204 = vadd.f32 %v116, %v203
    %v205 = vpop.f32.mrb[0].mxu0
    %206 = vdwg.mxu0
    %v207 = vmax.f32 %v201, 0.0
    %v208 = vmax.f32 %v204, 0.0
    %v209 = vld [vmem:[#allocation2] sm:$0xff]
    %v210 = vld [vmem:[#allocation2 + $0x8] sm:$0xff]
    %v211 = vpack.c.bf16 %v208, %v207
    %v212 = vld [vmem:[#allocation9] sm:$0xf]
    %v213 = vld [vmem:[#allocation9 + $0x4] sm:$0xf]
    %v214 = vld [vmem:[#allocation9 + $0x8] sm:$0xf]
    %v215 = vld [vmem:[#allocation9 + $0xc] sm:$0xf]
    %v216 = vld [vmem:[#allocation9 + $0x10] sm:$0xf]
    %v217 = vld [vmem:[#allocation9 + $0x14] sm:$0xf]
    %v218 = vld [vmem:[#allocation9 + $0x18] sm:$0xf]
    %v219 = vld [vmem:[#allocation9 + $0x1c] sm:$0xf]
    %v220 = vld [vmem:[#allocation9 + $0x20] sm:$0xf]
    %v221 = vld [vmem:[#allocation9 + $0x24] sm:$0xf]
    %v222 = vld [vmem:[#allocation9 + $0x28] sm:$0xf]
    %v223 = vld [vmem:[#allocation9 + $0x2c] sm:$0xf]
    %v224 = vld [vmem:[#allocation9 + $0x30] sm:$0xf]
    %v225 = vld [vmem:[#allocation9 + $0x34] sm:$0xf]
    %v226 = vld [vmem:[#allocation9 + $0x38] sm:$0xf]
    %v227 = vld [vmem:[#allocation9 + $0x3c] sm:$0xf]
    %v244 = vunpack.c.l.b16 %v212
    %v245 = vunpack.c.l.b16 %v213
    %v246 = vunpack.c.l.b16 %v214
    %v247 = vunpack.c.l.b16 %v215
    %v248 = vunpack.c.l.b16 %v216
    %v249 = vunpack.c.l.b16 %v217
    %v250 = vunpack.c.l.b16 %v218
    %v251 = vunpack.c.l.b16 %v219
    %v252 = vunpack.c.l.b16 %v220
    %v253 = vunpack.c.l.b16 %v221
    %v254 = vunpack.c.l.b16 %v222
    %v255 = vunpack.c.l.b16 %v223
    %v256 = vunpack.c.l.b16 %v224
    %v257 = vunpack.c.l.b16 %v225
    %v258 = vunpack.c.l.b16 %v226
    %v259 = vunpack.c.l.b16 %v227
    %v260 = vpack.c.b16 %v245, %v244
    %v261 = vpack.c.b16 %v247, %v246
    %v262 = vpack.c.b16 %v249, %v248
    %v263 = vpack.c.b16 %v251, %v250
    %v264 = vpack.c.b16 %v253, %v252
    %v265 = vpack.c.b16 %v255, %v254
    %v266 = vpack.c.b16 %v257, %v256
    %v267 = vpack.c.b16 %v259, %v258
    %276 = vmatprep.subr.bf16.mxu0 0
    %277 = vmatpush1.bf16.msra.mxu0 %v260
    %278 = vmatprep.subr.bf16.mxu0 0
    %279 = vmatpush1.bf16.msra.mxu0 %v261
    %280 = vmatprep.subr.bf16.mxu0 0
    %281 = vmatpush1.bf16.msra.mxu0 %v262
    %282 = vmatprep.subr.bf16.mxu0 0
    %283 = vmatpush1.bf16.msra.mxu0 %v263
    %284 = vmatprep.subr.bf16.mxu0 0
    %285 = vmatpush1.bf16.msra.mxu0 %v264
    %286 = vmatprep.subr.bf16.mxu0 0
    %287 = vmatpush1.bf16.msra.mxu0 %v265
    %288 = vmatprep.subr.bf16.mxu0 0
    %289 = vmatpush1.bf16.msra.mxu0 %v266
    %290 = vmatprep.subr.bf16.mxu0 0
    %291 = vmatpush1.bf16.msra.mxu0 %v267
    %292 = vmatprep.subr.bf16.mxu0 0
    %293 = vmatpush1.bf16.msra.mxu0 0
    %294 = vmatprep.subr.bf16.mxu0 0
    %295 = vmatpush1.bf16.msra.mxu0 0
    %296 = vmatprep.subr.bf16.mxu0 0
    %297 = vmatpush1.bf16.msra.mxu0 0
    %298 = vmatprep.subr.bf16.mxu0 0
    %299 = vmatpush1.bf16.msra.mxu0 0
    %300 = vmatprep.subr.bf16.mxu0 0
    %301 = vmatpush1.bf16.msra.mxu0 0
    %302 = vmatprep.subr.bf16.mxu0 0
    %303 = vmatpush1.bf16.msra.mxu0 0
    %304 = vmatprep.subr.bf16.mxu0 0
    %305 = vmatpush1.bf16.msra.mxu0 0
    %306 = vmatprep.subr.bf16.mxu0 0
    %307 = vmatpush1.bf16.msra.mxu0 0
    %308 = vmatprep.mubr.bf16.mxu0 0
    %309 = vmatmul.mubr.bf16.gmra.mrb[0].mxu0 %v211
    %v310 = vpop.f32.mrb[0].mxu0
    %v311 = vadd.f32 0.0, %v310
    %v312 = vpop.f32.mrb[0].mxu0
    %v313 = vpop.f32.mrb[0].mxu0
    %v314 = vadd.f32 0.0, %v313
    %v315 = vpop.f32.mrb[0].mxu0
    %316 = vdwg.mxu0
    %v317 = vadd.f32 %v209, %v311
    %v318 = vadd.f32 %v210, %v314
    %319 = vst [vmem:[#allocation2] sm:$0xff] %v317
    %320 = vst [vmem:[#allocation2 + $0x8] sm:$0xff] %v318
    // Predicated region
    $region46: #{tpu_custom_call.1} parent=1 // pred_check
      %p321 = pneg %p86
    $region47: #{tpu_custom_call.1} parent=1 // pred_check_branch
      %323 = sbr.rel (%p321) target = $region49
    $region48: #{tpu_custom_call.1} parent=1 // pred_region
      %v324 = vld [vmem:[#allocation2] sm:$0xff]
      %v325 = vld [vmem:[#allocation2 + $0x8] sm:$0xff]
      %v326 = vadd.f32 %v92, %v324
      %v327 = vadd.f32 %v93, %v325
      %v328 = vld [vmem:[#allocation11] sm:$0x1]
      %v330 = vlaneseq
      %v331 = vshrl.u32 %v330, 7
      %v332 = vsub.s32 0, %v331
      %v333 = vrot.slane %v328, %v332
      %v335 = vadd.f32 %v326, %v333
      %v336 = vadd.f32 %v327, %v333
      %vm337 = vcmp.ge.f32.partialorder %v335, 0.0
      %vm338 = vcmp.ge.f32.partialorder %v336, 0.0
      %v339 = vmul.f32 %v335, 0.01
      %v340 = vmul.f32 %v336, 0.01
      %v341 = vsel %vm337, %v335, %v339
      %v342 = vsel %vm338, %v336, %v340
      %343 = vst [vmem:[#allocation12] sm:$0xff] %v341
      %344 = vst [vmem:[#allocation12 + $0x8] sm:$0xff] %v342
    $region49: #{tpu_custom_call.1} parent=1 // pred_fallthru
      _
    // Predicated region
    $region50: #{tpu_custom_call.1} parent=1 // pred_check
      _
    $region51: #{tpu_custom_call.1} parent=1 // pred_check_branch
      %346 = sbr.rel (0) target = $region53
    $region52: #{tpu_custom_call.1} parent=1 // pred_region
      %s348 = ssub.s32 256, 256
      %349 = vsyncadd [#allocation5], %s348
      %s350 = sshll.u32 [#allocation12], 4
      %s351 = int_to_ptr.vmem [resolvable:$true] %s350
      %356 = dma.vmem_to_hbm [thread:$0]  %s351, 256, %s5, [#allocation5], 128, 128, 8
    $region53: #{tpu_custom_call.1} parent=1 // pred_fallthru
      _
    // Predicated region
    $region54: #{tpu_custom_call.1} parent=1 // pred_check
      _
    $region55: #{tpu_custom_call.1} parent=1 // pred_check_branch
      %358 = sbr.rel (0) target = $region57
    $region56: #{tpu_custom_call.1} parent=1 // pred_region
      %359 = dma.done [#allocation5], 256
    $region57: #{tpu_custom_call.1} parent=1 // pred_fallthru
      _
    %360 = vsyncpa [#allocation4], 1
    %361 = vsyncpa [#allocation7], 1
    %362 = vsyncpa [#allocation10], 1
    %363 = vsyncpa [#allocation5], 1

</llo_original>
